<compile_context>
chip_gen: v7x
topology: tpu7x:2x2x1
jax: 0.10.0
libtpu: 0.0.40
codegen_flags: <defaults>
</compile_context>

<pallas_src>
import jax
import jax.numpy as jnp
from jax.experimental import pallas as pl
from jax.experimental.pallas import tpu as pltpu

_SUBLANE = 8
_LANE = 128


def _droppath_kernel(scale_ref, x_ref, o_ref):
    # scale_ref: (SB, 1) f32   per-sample scale, 0.0 or 1/keep_prob
    # x_ref/o_ref: (SB, TN)    current tile of the flattened (B, N) input
    # Multiply in f32, cast only on store (free filler in a DMA-bound kernel).
    o_ref[...] = (x_ref[...].astype(jnp.float32) * scale_ref[...]).astype(o_ref.dtype)


def _choose_tiles(B, N, itemsize, target_block_bytes=4 << 20):
    """Pick (SB, TN) for streaming a (B, N) array.

    TN is either the full row N (one contiguous HBM run per sample) or a
    multiple of 128 (ragged tail masked by the cdiv grid).  SB is B itself
    when B < 8 (full-dim exemption), otherwise a multiple of 8 grown toward
    target_block_bytes.
    """
    sb_unit = B if B < _SUBLANE else _SUBLANE

    # Rows too long for a single (sb_unit, N) slab: tile the lane axis.
    if sb_unit * N * itemsize > target_block_bytes:
        tn = max(_LANE, (target_block_bytes // (sb_unit * itemsize)) // _LANE * _LANE)
        tn = min(tn, pl.cdiv(N, _LANE) * _LANE)
        return sb_unit, tn

    # Full rows fit: keep TN = N, grow SB (stays a multiple of 8; when B < 8
    # the >=2-batch-blocks condition is never met so SB stays == B).
    sb = sb_unit
    padded_b = pl.cdiv(B, _SUBLANE) * _SUBLANE
    while (sb < padded_b
           and 2 * sb * N * itemsize <= target_block_bytes
           and pl.cdiv(B, 2 * sb) >= 2):      # keep >=2 batch blocks (v7x: 2 TCs)
        sb *= 2

    tn = N
    # Batch axis collapsed to one block: split the lane axis in two (when the
    # slab is big enough to be worth it) so both v7x TensorCores get work.
    if pl.cdiv(B, sb) < 2 and N >= 2 * _LANE and sb * N * itemsize >= (512 << 10):
        tn = pl.cdiv(pl.cdiv(N, 2), _LANE) * _LANE
    return sb, tn


def drop_path(x, *, drop_prob, key, training=True):
    """JAX/Pallas equivalent of DropPath.forward (any rank, batch-first)."""
    if drop_prob == 0.0 or not training:
        return x
    keep_prob = 1.0 - drop_prob

    B = x.shape[0]
    N = 1
    for d in x.shape[1:]:
        N *= d

    # Per-sample Bernoulli(keep_prob) mask, torch-style: floor(keep_prob + rand).
    # Fold 1/keep_prob into it so the kernel is a single broadcast multiply.
    u = jax.random.uniform(key, (B,), dtype=jnp.float32)
    mask = jnp.floor(keep_prob + u)
    scale = (mask * (1.0 / keep_prob)).reshape(B, 1).astype(jnp.float32)

    x2 = x.reshape(B, N)
    itemsize = jnp.dtype(x.dtype).itemsize
    SB, TN = _choose_tiles(B, N, itemsize)
    grid = (pl.cdiv(B, SB), pl.cdiv(N, TN))

    # Working set: in + out, double-buffered, plus slack; never the whole chip.
    block_bytes = SB * TN * itemsize
    vmem_limit = min(32 << 20, 4 * block_bytes + (8 << 20))

    out = pl.pallas_call(
        _droppath_kernel,
        out_shape=jax.ShapeDtypeStruct((B, N), x.dtype),
        grid_spec=pltpu.PrefetchScalarGridSpec(
            num_scalar_prefetch=0,
            grid=grid,
            in_specs=[
                pl.BlockSpec((SB, 1), lambda i, j: (i, 0)),    # per-sample scale
                pl.BlockSpec((SB, TN), lambda i, j: (i, j)),   # data tile
            ],
            out_specs=pl.BlockSpec((SB, TN), lambda i, j: (i, j)),
        ),
        input_output_aliases={1: 0},   # donate x2's HBM buffer to the output
        compiler_params=pltpu.CompilerParams(
            dimension_semantics=("parallel", "parallel"),
            vmem_limit_bytes=vmem_limit,
        ),
    )(scale, x2)

    return out.reshape(x.shape)


if __name__ == "__main__":
    key = jax.random.PRNGKey(0)
    k_x, k_mask, k_x2 = jax.random.split(key, 3)
    drop_prob = 0.25
    keep_prob = 1.0 - drop_prob

    # Shared per-sample mask reference (same key the kernel wrapper uses).
    B, C, H, W = 2, 4, 16, 16
    u = jax.random.uniform(k_mask, (B,), dtype=jnp.float32)
    mask = jnp.floor(keep_prob + u).reshape(B, 1, 1, 1)

    # --- f32 case, N = 4*16*16 = 1024 (multiple of 128) ---
    x = jax.random.normal(k_x, (B, C, H, W), dtype=jnp.float32)
    ref = x / keep_prob * mask                       # reference computed up front

    out = drop_path(x, drop_prob=drop_prob, key=k_mask, training=True)
    out = jax.block_until_ready(out)
    assert jnp.allclose(out, ref, atol=1e-5, rtol=1e-5), "f32 mismatch vs reference"

    # --- bf16 case, non-128-multiple spatial (ViG-style 14x14 -> N = 784) ---
    Hb = Wb = 14
    x_bf = jax.random.normal(k_x2, (B, C, Hb, Wb), dtype=jnp.float32).astype(jnp.bfloat16)
    ref_bf = (x_bf.astype(jnp.float32) / keep_prob * mask).astype(jnp.bfloat16)

    out_bf = drop_path(x_bf, drop_prob=drop_prob, key=k_mask, training=True)
    out_bf = jax.block_until_ready(out_bf)
    assert jnp.allclose(out_bf.astype(jnp.float32), ref_bf.astype(jnp.float32),
                        atol=1e-2, rtol=1e-2), "bf16 mismatch vs reference"

    # --- eval-mode / drop_prob == 0 identity paths ---
    out_eval = drop_path(x, drop_prob=drop_prob, key=k_mask, training=False)
    assert jnp.array_equal(out_eval, x)
    out_p0 = drop_path(x, drop_prob=0.0, key=k_mask, training=True)
    assert jnp.array_equal(out_p0, x)

    print("KERNEL_OK")
</pallas_src>

<mosaic_0001>
module attributes {stable_mosaic.version = 11 : i64} {
  func.func @_droppath_kernel(%arg0: i32, %arg1: i32, %arg2: memref<2x1xf32, #tpu.memory_space<vmem>>, %arg3: memref<2x1024xf32, #tpu.memory_space<vmem>>, %arg4: memref<2x1024xf32, #tpu.memory_space<vmem>>) attributes {dimension_semantics = [#tpu.dimension_semantics<parallel>, #tpu.dimension_semantics<parallel>], iteration_bounds = array<i64: 1, 1>, scalar_prefetch = 0 : i64, scratch_operands = 0 : i64, tpu.core_type = #tpu.core_type<tc>, window_params = [{transform_indices = @transform_0, window_bounds = array<i64: 2, 1>}, {transform_indices = @transform_1, window_bounds = array<i64: 2, 1024>}, {transform_indices = @transform_2, window_bounds = array<i64: 2, 1024>}]} {
    %c0 = arith.constant 0 : index
    %c0_0 = arith.constant 0 : index
    %0 = vector.load %arg3[%c0, %c0_0] : memref<2x1024xf32, #tpu.memory_space<vmem>>, vector<2x1024xf32>
    %c0_1 = arith.constant 0 : index
    %c0_2 = arith.constant 0 : index
    %1 = vector.load %arg2[%c0_1, %c0_2] : memref<2x1xf32, #tpu.memory_space<vmem>>, vector<2x1xf32>
    %2 = vector.broadcast %1 : vector<2x1xf32> to vector<2x1024xf32>
    %3 = arith.mulf %0, %2 : vector<2x1024xf32>
    %c0_3 = arith.constant 0 : index
    %c0_4 = arith.constant 0 : index
    %4 = vector.load %arg4[%c0_3, %c0_4] : memref<2x1024xf32, #tpu.memory_space<vmem>>, vector<2x1024xf32>
    tpu.vector_store %arg4[%c0_3, %c0_4], %3 {strides = array<i32>} : memref<2x1024xf32, #tpu.memory_space<vmem>>, vector<2x1024xf32>,
    return
  }
  func.func @transform_0(%arg0: i32, %arg1: i32) -> (i32, i32) {
    %c0_i32 = arith.constant 0 : i32
    %c0_i32_0 = arith.constant 0 : i32
    return %arg0, %c0_i32 : i32, i32
  }
  func.func @transform_1(%arg0: i32, %arg1: i32) -> (i32, i32) {
    %c0_i32 = arith.constant 0 : i32
    return %arg0, %arg1 : i32, i32
  }
  func.func @transform_2(%arg0: i32, %arg1: i32) -> (i32, i32) {
    %c0_i32 = arith.constant 0 : i32
    return %arg0, %arg1 : i32, i32
  }
}

</mosaic_0001>

<llo_original>
// kernel: tpu_custom_call.1
$region0: #{tpu_custom_call.1}
  #allocation0 [shape = 'u32[]', space=smem, size = 0x4, offset = 0x4, fixed_abs, tag = 'smem constant byte address 0x4 - core index']
  #allocation1 [shape = 'u32[144,128]{1,0:T(1,128)}', space=vmem, size = 0x12000, scoped, tag = 'internal scratch']
  %s0 = inlined_call_operand.vmem [shape: f32[2,1], index: 0, kind: input, shape index: {}]
  %s1 = inlined_call_operand.hbm [shape: f32[2,1024], index: 1, kind: input, shape index: {}, may-alias: {1,2}]
  %s2 = inlined_call_operand.hbm [shape: f32[2,1024], index: 2, kind: output, shape index: {}, may-alias: {1,2}]
  %s3 = sld [smem:[#allocation0]]
  $region22: #{tpu_custom_call.1} parent=0
    _
  %s5 = ssub.s32 1, %s3
  %s6 = scalar_select 0, %s5, %s3
  $region1: #{tpu_custom_call.1} parent=0
    #allocation2 [shape = 'u8[8192]{0}', space=vmem, size = 0x2000, scoped, tag = 'input window, operand 1, single buffered']
    #allocation3 [shape = 's32[1]{0}', space=sflag, size = 0x4, scoped, tag = 'scoped memory for tpu_custom_call.1']
    #allocation4 [shape = 's32[1]{0}', space=sflag, size = 0x4, scoped, tag = 'scoped memory for tpu_custom_call.1']
    #allocation5 [shape = 'u8[8192]{0}', space=vmem, size = 0x2000, scoped, tag = 'output window, operand 0, single buffered']
    %7 = vsyncpa [#allocation3], 0
    %8 = vsyncpa [#allocation4], 0
    // Predicated region
    $region2: #{tpu_custom_call.1} parent=1 // pred_check
      _
    $region3: #{tpu_custom_call.1} parent=1 // pred_check_branch
      %10 = sbr.rel (0) target = $region5
    $region4: #{tpu_custom_call.1} parent=1 // pred_region
      _
    $region5: #{tpu_custom_call.1} parent=1 // pred_fallthru
      _
    // Predicated region
    $region6: #{tpu_custom_call.1} parent=1 // pred_check
      _
    $region7: #{tpu_custom_call.1} parent=1 // pred_check_branch
      %12 = sbr.rel (0) target = $region9
    $region8: #{tpu_custom_call.1} parent=1 // pred_region
      %s14 = ssub.s32 256, 256
      %15 = vsyncadd [#allocation3], %s14
      %s17 = sshll.u32 [#allocation2], 4
      %s18 = int_to_ptr.vmem [resolvable:$true] %s17
      %20 = dma.hbm_to_vmem [thread:$0]  %s1, 256, %s18, [#allocation3]
    $region9: #{tpu_custom_call.1} parent=1 // pred_fallthru
      _
    // Predicated region
    $region10: #{tpu_custom_call.1} parent=1 // pred_check
      _
    $region11: #{tpu_custom_call.1} parent=1 // pred_check_branch
      %22 = sbr.rel (0) target = $region13
    $region12: #{tpu_custom_call.1} parent=1 // pred_region
      %23 = dma.done [#allocation3], 256
    $region13: #{tpu_custom_call.1} parent=1 // pred_fallthru
      _
    %v24 = vld [vmem:[#allocation2] sm:$0xff]
    %v25 = vld [vmem:[#allocation2 + $0x8] sm:$0xff]
    %v26 = vld [vmem:[%s0] sm:$0x3]
    %28 = vset.pattern.permute.xlu0 0
    %29 = vperm.xlu0 %28, %v26
    %v30 = vpop.permute.xlu0 %29
    %v32 = vunpack.c.l.s4 269488144
    %v33 = vunpack.c.0.s8 %v32
    %v34 = vlaneseq
    %v35 = vshrl.u32 %v34, 7
    %v36 = vsub.s32 %v33, %v35
    %v37 = vrot.slane %v30, %v36
    %v39 = vmul.f32 %v24, %v37
    %v40 = vmul.f32 %v25, %v37
    %41 = vst [vmem:[#allocation5] sm:$0xff] %v39
    %42 = vst [vmem:[#allocation5 + $0x8] sm:$0xff] %v40
    // Predicated region
    $region14: #{tpu_custom_call.1} parent=1 // pred_check
      _
    $region15: #{tpu_custom_call.1} parent=1 // pred_check_branch
      %44 = sbr.rel (0) target = $region17
    $region16: #{tpu_custom_call.1} parent=1 // pred_region
      %s46 = ssub.s32 256, 256
      %47 = vsyncadd [#allocation4], %s46
      %s49 = sshll.u32 [#allocation5], 4
      %s50 = int_to_ptr.vmem [resolvable:$true] %s49
      %52 = dma.vmem_to_hbm [thread:$0]  %s50, 256, %s2, [#allocation4]
    $region17: #{tpu_custom_call.1} parent=1 // pred_fallthru
      _
    // Predicated region
    $region18: #{tpu_custom_call.1} parent=1 // pred_check
      _
    $region19: #{tpu_custom_call.1} parent=1 // pred_check_branch
      %54 = sbr.rel (0) target = $region21
    $region20: #{tpu_custom_call.1} parent=1 // pred_region
      %55 = dma.done [#allocation4], 256
    $region21: #{tpu_custom_call.1} parent=1 // pred_fallthru
      _
    %56 = vsyncpa [#allocation3], 1
    %57 = vsyncpa [#allocation4], 1

</llo_original>
